<compile_context>
chip_gen: v7x
topology: tpu7x:2x2x1
jax: 0.10.0
libtpu: 0.0.40
codegen_flags: <defaults>
</compile_context>

<pallas_src>
import functools

import jax
import jax.numpy as jnp
from jax.experimental import pallas as pl
from jax.experimental.pallas import tpu as pltpu

_SLAB = (8, 128)  # one f32 vreg tile

# Packed input slab layout (rows x cols inside the (8,128) tile):
#   w1 -> rows 0:2, cols  0:5    b1 -> row 2, cols  0:5
#   w2 -> rows 0:5, cols  8:11   b2 -> row 5, cols  8:11
#   w3 -> rows 0:3, cols 16:17   b3 -> row 3, cols 16:17
#   x  -> rows 0:B, cols 24:26   y  -> rows 0:B, col 26
# Output slab layout:
#   a3 -> rows 0:B, col 0        loss -> [0, 1]


def mlp_forward_kernel(s_ref, out_ref, *, batch):
    s = s_ref[...]                               # (8,128) slab: ONE vector load

    w1 = s[0:2, 0:5]                             # (2,5)
    b1 = s[2:3, 0:5]                             # (1,5)
    w2 = s[0:5, 8:11]                            # (5,3)
    b2 = s[5:6, 8:11]                            # (1,3)
    w3 = s[0:3, 16:17]                           # (3,1)
    b3 = s[3:4, 16:17]                           # (1,1)
    x = s[0:batch, 24:26]                        # (B,2)
    y = s[0:batch, 26:27]                        # (B,1)

    # layer 1: tanh(x @ w1 + b1) -- unrolled K=2 VPU FMAs (no MXU)
    z1 = b1 + x[:, 0:1] * w1[0:1, :] + x[:, 1:2] * w1[1:2, :]       # (B,5)
    a1 = jnp.tanh(z1)

    # layer 2: tanh(a1 @ w2 + b2) -- unrolled K=5
    z2 = b2
    for k in range(5):
        z2 = z2 + a1[:, k:k + 1] * w2[k:k + 1, :]                   # (B,3)
    a2 = jnp.tanh(z2)

    # layer 3: tanh(a2 @ w3 + b3) -- unrolled K=3
    z3 = b3
    for k in range(3):
        z3 = z3 + a2[:, k:k + 1] * w3[k:k + 1, :]                   # (B,1)
    a3 = jnp.tanh(z3)

    # MSE loss vs y (mean over the B*1 elements)
    diff = a3 - y
    loss11 = jnp.sum(diff * diff, axis=0, keepdims=True) * (1.0 / batch)

    # Single full-tile output block: a3 in column 0, loss at [0, 1].
    out_ref[...] = jnp.zeros(_SLAB, jnp.float32)
    out_ref[0:batch, 0:1] = a3
    out_ref[0:1, 1:2] = loss11


@jax.jit
def mlp_forward(x, w1, b1, w2, b2, w3, b3, y):
    """x: (B,2), y: (B,1). Returns (a3 (B,1), scalar loss), like MLPNet.forward."""
    batch = x.shape[0]
    assert batch <= _SLAB[0], "batch must fit in one 8-sublane slab"

    # Pack everything into ONE (8,128) slab (wrapper-side layout plumbing).
    slab = jnp.zeros(_SLAB, jnp.float32)
    slab = slab.at[0:2, 0:5].set(w1)
    slab = slab.at[2:3, 0:5].set(b1)
    slab = slab.at[0:5, 8:11].set(w2)
    slab = slab.at[5:6, 8:11].set(b2)
    slab = slab.at[0:3, 16:17].set(w3)
    slab = slab.at[3:4, 16:17].set(b3)
    slab = slab.at[0:batch, 24:26].set(x)
    slab = slab.at[0:batch, 26:27].set(y)

    vmem = pl.BlockSpec(memory_space=pltpu.MemorySpace.VMEM)
    out = pl.pallas_call(
        functools.partial(mlp_forward_kernel, batch=batch),
        out_shape=jax.ShapeDtypeStruct(_SLAB, jnp.float32),
        in_specs=[vmem],
        out_specs=vmem,
    )(slab)

    a3 = out[0:batch, 0:1]
    loss = out[0, 1]
    return a3, loss


def init_params(key):
    """PyTorch-style init: U(-1/sqrt(fan_in), 1/sqrt(fan_in)) for weights,
    zeros for biases (nn.init.constant_(bias, 0))."""
    k1, k2, k3 = jax.random.split(key, 3)

    def linear_w(k, fan_in, fan_out):
        bound = 1.0 / jnp.sqrt(fan_in)
        # stored as (in, out) for the kernel
        return jax.random.uniform(k, (fan_in, fan_out), jnp.float32,
                                  minval=-bound, maxval=bound)

    w1 = linear_w(k1, 2, 5)
    b1 = jnp.zeros((1, 5), jnp.float32)
    w2 = linear_w(k2, 5, 3)
    b2 = jnp.zeros((1, 3), jnp.float32)
    w3 = linear_w(k3, 3, 1)
    b3 = jnp.zeros((1, 1), jnp.float32)
    return w1, b1, w2, b2, w3, b3


if __name__ == "__main__":
    key = jax.random.PRNGKey(0)
    pkey, xkey = jax.random.split(key)

    # Targets fixed by the reference module: y = [0, 1, 1]
    y = jnp.array([0.0, 1.0, 1.0], dtype=jnp.float32)
    B = y.shape[0]

    # Input x: (batch=3, features=2)
    x = jax.random.normal(xkey, (B, 2), dtype=jnp.float32)

    w1, b1, w2, b2, w3, b3 = init_params(pkey)

    a3, loss = mlp_forward(x, w1, b1, w2, b2, w3, b3, y[:, None])
    a3 = jax.block_until_ready(a3)
    loss = jax.block_until_ready(loss)

    # Pure-JAX f32 reference (HIGHEST precision so the reference matmuls do not
    # go through bf16 MXU passes and skew the comparison).
    hp = jax.lax.Precision.HIGHEST
    a1_ref = jnp.tanh(jnp.dot(x, w1, precision=hp) + b1)
    a2_ref = jnp.tanh(jnp.dot(a1_ref, w2, precision=hp) + b2)
    a3_ref = jnp.tanh(jnp.dot(a2_ref, w3, precision=hp) + b3)
    loss_ref = jnp.mean((a3_ref - y[:, None]) ** 2)

    assert jnp.allclose(a3, a3_ref, atol=1e-4), (a3, a3_ref)
    assert jnp.allclose(loss, loss_ref, atol=1e-4), (loss, loss_ref)

    print("KERNEL_OK")
</pallas_src>

<mosaic_0001>
module attributes {stable_mosaic.version = 11 : i64} {
  func.func @mlp_forward_kernel(%arg0: memref<8x128xf32, #tpu.memory_space<vmem>>, %arg1: memref<8x128xf32, #tpu.memory_space<vmem>>) attributes {dimension_semantics = [], scalar_prefetch = 0 : i64, scratch_operands = 0 : i64, tpu.core_type = #tpu.core_type<tc>} {
    %c0 = arith.constant 0 : index
    %c0_0 = arith.constant 0 : index
    %0 = vector.load %arg0[%c0, %c0_0] : memref<8x128xf32, #tpu.memory_space<vmem>>, vector<8x128xf32>
    %1 = vector.extract_strided_slice %0 {offsets = [0, 0], sizes = [2, 5], strides = [1, 1]} : vector<8x128xf32> to vector<2x5xf32>
    %2 = vector.extract_strided_slice %0 {offsets = [2, 0], sizes = [1, 5], strides = [1, 1]} : vector<8x128xf32> to vector<1x5xf32>
    %3 = vector.extract_strided_slice %0 {offsets = [0, 8], sizes = [5, 3], strides = [1, 1]} : vector<8x128xf32> to vector<5x3xf32>
    %4 = vector.extract_strided_slice %0 {offsets = [5, 8], sizes = [1, 3], strides = [1, 1]} : vector<8x128xf32> to vector<1x3xf32>
    %5 = vector.extract_strided_slice %0 {offsets = [0, 16], sizes = [3, 1], strides = [1, 1]} : vector<8x128xf32> to vector<3x1xf32>
    %6 = vector.extract_strided_slice %0 {offsets = [3, 16], sizes = [1, 1], strides = [1, 1]} : vector<8x128xf32> to vector<1x1xf32>
    %7 = vector.extract_strided_slice %0 {offsets = [0, 24], sizes = [3, 2], strides = [1, 1]} : vector<8x128xf32> to vector<3x2xf32>
    %8 = vector.extract_strided_slice %0 {offsets = [0, 26], sizes = [3, 1], strides = [1, 1]} : vector<8x128xf32> to vector<3x1xf32>
    %9 = vector.extract_strided_slice %7 {offsets = [0, 0], sizes = [3, 1], strides = [1, 1]} : vector<3x2xf32> to vector<3x1xf32>
    %10 = vector.extract_strided_slice %1 {offsets = [0, 0], sizes = [1, 5], strides = [1, 1]} : vector<2x5xf32> to vector<1x5xf32>
    %11 = vector.broadcast %9 : vector<3x1xf32> to vector<3x5xf32>
    %12 = vector.broadcast %10 : vector<1x5xf32> to vector<3x5xf32>
    %13 = arith.mulf %11, %12 : vector<3x5xf32>
    %14 = vector.broadcast %2 : vector<1x5xf32> to vector<3x5xf32>
    %15 = arith.addf %14, %13 : vector<3x5xf32>
    %16 = vector.extract_strided_slice %7 {offsets = [0, 1], sizes = [3, 1], strides = [1, 1]} : vector<3x2xf32> to vector<3x1xf32>
    %17 = vector.extract_strided_slice %1 {offsets = [1, 0], sizes = [1, 5], strides = [1, 1]} : vector<2x5xf32> to vector<1x5xf32>
    %18 = vector.broadcast %16 : vector<3x1xf32> to vector<3x5xf32>
    %19 = vector.broadcast %17 : vector<1x5xf32> to vector<3x5xf32>
    %20 = arith.mulf %18, %19 : vector<3x5xf32>
    %21 = arith.addf %15, %20 : vector<3x5xf32>
    %22 = math.tanh %21 : vector<3x5xf32>
    %23 = vector.extract_strided_slice %22 {offsets = [0, 0], sizes = [3, 1], strides = [1, 1]} : vector<3x5xf32> to vector<3x1xf32>
    %24 = vector.extract_strided_slice %3 {offsets = [0, 0], sizes = [1, 3], strides = [1, 1]} : vector<5x3xf32> to vector<1x3xf32>
    %25 = vector.broadcast %23 : vector<3x1xf32> to vector<3x3xf32>
    %26 = vector.broadcast %24 : vector<1x3xf32> to vector<3x3xf32>
    %27 = arith.mulf %25, %26 : vector<3x3xf32>
    %28 = vector.broadcast %4 : vector<1x3xf32> to vector<3x3xf32>
    %29 = arith.addf %28, %27 : vector<3x3xf32>
    %30 = vector.extract_strided_slice %22 {offsets = [0, 1], sizes = [3, 1], strides = [1, 1]} : vector<3x5xf32> to vector<3x1xf32>
    %31 = vector.extract_strided_slice %3 {offsets = [1, 0], sizes = [1, 3], strides = [1, 1]} : vector<5x3xf32> to vector<1x3xf32>
    %32 = vector.broadcast %30 : vector<3x1xf32> to vector<3x3xf32>
    %33 = vector.broadcast %31 : vector<1x3xf32> to vector<3x3xf32>
    %34 = arith.mulf %32, %33 : vector<3x3xf32>
    %35 = arith.addf %29, %34 : vector<3x3xf32>
    %36 = vector.extract_strided_slice %22 {offsets = [0, 2], sizes = [3, 1], strides = [1, 1]} : vector<3x5xf32> to vector<3x1xf32>
    %37 = vector.extract_strided_slice %3 {offsets = [2, 0], sizes = [1, 3], strides = [1, 1]} : vector<5x3xf32> to vector<1x3xf32>
    %38 = vector.broadcast %36 : vector<3x1xf32> to vector<3x3xf32>
    %39 = vector.broadcast %37 : vector<1x3xf32> to vector<3x3xf32>
    %40 = arith.mulf %38, %39 : vector<3x3xf32>
    %41 = arith.addf %35, %40 : vector<3x3xf32>
    %42 = vector.extract_strided_slice %22 {offsets = [0, 3], sizes = [3, 1], strides = [1, 1]} : vector<3x5xf32> to vector<3x1xf32>
    %43 = vector.extract_strided_slice %3 {offsets = [3, 0], sizes = [1, 3], strides = [1, 1]} : vector<5x3xf32> to vector<1x3xf32>
    %44 = vector.broadcast %42 : vector<3x1xf32> to vector<3x3xf32>
    %45 = vector.broadcast %43 : vector<1x3xf32> to vector<3x3xf32>
    %46 = arith.mulf %44, %45 : vector<3x3xf32>
    %47 = arith.addf %41, %46 : vector<3x3xf32>
    %48 = vector.extract_strided_slice %22 {offsets = [0, 4], sizes = [3, 1], strides = [1, 1]} : vector<3x5xf32> to vector<3x1xf32>
    %49 = vector.extract_strided_slice %3 {offsets = [4, 0], sizes = [1, 3], strides = [1, 1]} : vector<5x3xf32> to vector<1x3xf32>
    %50 = vector.broadcast %48 : vector<3x1xf32> to vector<3x3xf32>
    %51 = vector.broadcast %49 : vector<1x3xf32> to vector<3x3xf32>
    %52 = arith.mulf %50, %51 : vector<3x3xf32>
    %53 = arith.addf %47, %52 : vector<3x3xf32>
    %54 = math.tanh %53 : vector<3x3xf32>
    %55 = vector.extract_strided_slice %54 {offsets = [0, 0], sizes = [3, 1], strides = [1, 1]} : vector<3x3xf32> to vector<3x1xf32>
    %56 = vector.extract_strided_slice %5 {offsets = [0, 0], sizes = [1, 1], strides = [1, 1]} : vector<3x1xf32> to vector<1x1xf32>
    %57 = vector.broadcast %56 : vector<1x1xf32> to vector<3x1xf32>
    %58 = arith.mulf %55, %57 : vector<3x1xf32>
    %59 = vector.broadcast %6 : vector<1x1xf32> to vector<3x1xf32>
    %60 = arith.addf %59, %58 : vector<3x1xf32>
    %61 = vector.extract_strided_slice %54 {offsets = [0, 1], sizes = [3, 1], strides = [1, 1]} : vector<3x3xf32> to vector<3x1xf32>
    %62 = vector.extract_strided_slice %5 {offsets = [1, 0], sizes = [1, 1], strides = [1, 1]} : vector<3x1xf32> to vector<1x1xf32>
    %63 = vector.broadcast %62 : vector<1x1xf32> to vector<3x1xf32>
    %64 = arith.mulf %61, %63 : vector<3x1xf32>
    %65 = arith.addf %60, %64 : vector<3x1xf32>
    %66 = vector.extract_strided_slice %54 {offsets = [0, 2], sizes = [3, 1], strides = [1, 1]} : vector<3x3xf32> to vector<3x1xf32>
    %67 = vector.extract_strided_slice %5 {offsets = [2, 0], sizes = [1, 1], strides = [1, 1]} : vector<3x1xf32> to vector<1x1xf32>
    %68 = vector.broadcast %67 : vector<1x1xf32> to vector<3x1xf32>
    %69 = arith.mulf %66, %68 : vector<3x1xf32>
    %70 = arith.addf %65, %69 : vector<3x1xf32>
    %71 = math.tanh %70 : vector<3x1xf32>
    %72 = arith.subf %71, %8 : vector<3x1xf32>
    %73 = arith.mulf %72, %72 : vector<3x1xf32>
    %cst = arith.constant dense<0.000000e+00> : vector<1xf32>
    %74 = vector.multi_reduction <add>, %73, %cst [0] : vector<3x1xf32> to vector<1xf32>
    %75 = vector.shape_cast %74 : vector<1xf32> to vector<1x1xf32>
    %cst_1 = arith.constant 0.333333343 : f32
    %76 = vector.broadcast %cst_1 : f32 to vector<1x1xf32>
    %77 = arith.mulf %75, %76 : vector<1x1xf32>
    %cst_2 = arith.constant 0.000000e+00 : f32
    %78 = vector.broadcast %cst_2 : f32 to vector<8x128xf32>
    %c0_3 = arith.constant 0 : index
    %c0_4 = arith.constant 0 : index
    %79 = vector.load %arg1[%c0_3, %c0_4] : memref<8x128xf32, #tpu.memory_space<vmem>>, vector<8x128xf32>
    tpu.vector_store %arg1[%c0_3, %c0_4], %78 {strides = array<i32>} : memref<8x128xf32, #tpu.memory_space<vmem>>, vector<8x128xf32>,
    %c0_5 = arith.constant 0 : index
    %c0_6 = arith.constant 0 : index
    %80 = vector.load %arg1[%c0_5, %c0_6] : memref<8x128xf32, #tpu.memory_space<vmem>>, vector<3x1xf32>
    tpu.vector_store %arg1[%c0_5, %c0_6], %71 {strides = array<i32>} : memref<8x128xf32, #tpu.memory_space<vmem>>, vector<3x1xf32>,
    %c0_7 = arith.constant 0 : index
    %c1 = arith.constant 1 : index
    %81 = vector.load %arg1[%c0_7, %c1] : memref<8x128xf32, #tpu.memory_space<vmem>>, vector<1x1xf32>
    tpu.vector_store %arg1[%c0_7, %c1], %77 {strides = array<i32>} : memref<8x128xf32, #tpu.memory_space<vmem>>, vector<1x1xf32>,
    return
  }
}

</mosaic_0001>

<llo_original>
// kernel: mlp_forward.1
$region0: #{mlp_forward.1}
  #allocation0 [shape = 'u32[]', space=smem, size = 0x4, offset = 0x4, fixed_abs, tag = 'smem constant byte address 0x4 - core index']
  #allocation1 [shape = 'u32[144,128]{1,0:T(1,128)}', space=vmem, size = 0x12000, scoped, tag = 'internal scratch']
  %s0 = inlined_call_operand.vmem [shape: f32[8,128], index: 0, kind: input, shape index: {}]
  %s1 = inlined_call_operand.vmem [shape: f32[8,128], index: 1, kind: output, shape index: {}]
  %s2 = sld [smem:[#allocation0]]
  $region14: #{mlp_forward.1} parent=0
    _
  %s4 = ssub.s32 1, %s2
  %s5 = scalar_select 0, %s4, %s2
  // Predicated region
  $region2: #{mlp_forward.1} parent=0 // pred_check
    _
  $region3: #{mlp_forward.1} parent=0 // pred_check_branch
    %7 = sbr.rel (0) target = $region5
  $region4: #{mlp_forward.1} parent=0 // pred_region
    _
  $region5: #{mlp_forward.1} parent=0 // pred_fallthru
    _
  %v8 = vld [vmem:[%s0] sm:$0xff]
  %10 = vset.pattern.permute.xlu0 24
  %11 = vperm.xlu0 %10, %v8
  %v12 = vpop.permute.xlu0 %11
  %v14 = vlaneseq
  %v15 = vshrl.u32 %v14, 7
  %v16 = vsub.s32 0, %v15
  %v17 = vrot.slane %v8, %v16
  %v18 = vmul.f32 %v12, %v17
  %v19 = vlaneseq
  %v20 = vshrl.u32 %v19, 7
  %v21 = vsub.s32 2, %v20
  %v22 = vrot.slane %v8, %v21
  %v23 = vadd.f32 %v22, %v18
  %24 = vset.pattern.permute.xlu0 25
  %25 = vperm.xlu0 %24, %v8
  %v26 = vpop.permute.xlu0 %25
  %v28 = vlaneseq
  %v29 = vshrl.u32 %v28, 7
  %v30 = vsub.s32 1, %v29
  %v31 = vrot.slane %v8, %v30
  %v32 = vmul.f32 %v26, %v31
  %v33 = vadd.f32 %v23, %v32
  %v34 = vtanh.pop %v33
  %36 = vset.pattern.permute.xlu0 0
  %37 = vperm.xlu0 %36, %v34
  %v38 = vpop.permute.xlu0 %37
  %v40 = vmul.f32 %v38, %v17
  %v41 = vlaneseq
  %v42 = vshrl.u32 %v41, 7
  %v43 = vsub.s32 5, %v42
  %v44 = vrot.slane %v8, %v43
  %v45 = vadd.f32 %v44, %v40
  %46 = vset.pattern.permute.xlu0 1
  %47 = vperm.xlu0 %46, %v34
  %v48 = vpop.permute.xlu0 %47
  %v50 = vmul.f32 %v48, %v31
  %v51 = vadd.f32 %v45, %v50
  %52 = vset.pattern.permute.xlu0 2
  %53 = vperm.xlu0 %52, %v34
  %v54 = vpop.permute.xlu0 %53
  %v56 = vmul.f32 %v54, %v22
  %v57 = vadd.f32 %v51, %v56
  %58 = vset.pattern.permute.xlu0 3
  %59 = vperm.xlu0 %58, %v34
  %v60 = vpop.permute.xlu0 %59
  %v62 = vlaneseq
  %v63 = vshrl.u32 %v62, 7
  %v64 = vsub.s32 3, %v63
  %v65 = vrot.slane %v8, %v64
  %v66 = vmul.f32 %v60, %v65
  %v67 = vadd.f32 %v57, %v66
  %68 = vset.pattern.permute.xlu0 4
  %69 = vperm.xlu0 %68, %v34
  %v70 = vpop.permute.xlu0 %69
  %v72 = vlaneseq
  %v73 = vshrl.u32 %v72, 7
  %v74 = vsub.s32 4, %v73
  %v75 = vrot.slane %v8, %v74
  %v76 = vmul.f32 %v70, %v75
  %v77 = vadd.f32 %v67, %v76
  %v78 = vtanh.pop %v77
  %80 = vrot.lane.b32.xlu0 %v17, 120
  %v81 = vpop.permute.xlu0 %80
  %v83 = vmul.f32 %v78, %v81
  %85 = vrot.lane.b32.xlu0 %v83, 8
  %v86 = vpop.permute.xlu0 %85
  %v88 = vadd.f32 %v65, %v86
  %90 = vrot.lane.b32.xlu0 %v31, 121
  %v91 = vpop.permute.xlu0 %90
  %v93 = vmul.f32 %v78, %v91
  %95 = vrot.lane.b32.xlu0 %v93, 7
  %v96 = vpop.permute.xlu0 %95
  %v98 = vadd.f32 %v88, %v96
  %100 = vrot.lane.b32.xlu0 %v22, 122
  %v101 = vpop.permute.xlu0 %100
  %v103 = vmul.f32 %v78, %v101
  %105 = vrot.lane.b32.xlu0 %v103, 6
  %v106 = vpop.permute.xlu0 %105
  %v108 = vadd.f32 %v98, %v106
  %v109 = vtanh.pop %v108
  %110 = vrot.lane.b32.xlu0 %v8, 118
  %v111 = vpop.permute.xlu0 %110
  %v113 = vsub.f32 %v109, %v111
  %v114 = vmul.f32 %v113, %v113
  %vm115 = vcmask 133248
  %v116 = vsel %vm115, %v114, 0.0
  %v117 = vrot.slane %v116, 4
  %v118 = vadd.f32 %v116, %v117
  %v119 = vrot.slane %v118, 2
  %v120 = vadd.f32 %v118, %v119
  %v121 = vrot.slane %v120, 1
  %v122 = vadd.f32 %v120, %v121
  %v123 = vmul.f32 %v122, 0.33333334
  %124 = vst [vmem:[%s1] sm:$0xff] 0.0
  %126 = vrot.lane.b32.xlu0 %v109, 112
  %v127 = vpop.permute.xlu0 %126
  %vm129 = vcmask 2048
  %130 = vst.msk [vmem:[%s1] sm:$0x7] %vm129, %v127
  %132 = vrot.lane.b32.xlu0 %v123, 113
  %v133 = vpop.permute.xlu0 %132
  %vm135 = vcmask 8200
  %136 = vst.msk [vmem:[%s1] sm:$0x1] %vm135, %v133
  // Predicated region
  $region6: #{mlp_forward.1} parent=0 // pred_check
    _
  $region7: #{mlp_forward.1} parent=0 // pred_check_branch
    %138 = sbr.rel (0) target = $region9
  $region8: #{mlp_forward.1} parent=0 // pred_region
    _
  $region9: #{mlp_forward.1} parent=0 // pred_fallthru
    _
  // Predicated region
  $region10: #{mlp_forward.1} parent=0 // pred_check
    _
  $region11: #{mlp_forward.1} parent=0 // pred_check_branch
    %140 = sbr.rel (0) target = $region13
  $region12: #{mlp_forward.1} parent=0 // pred_region
    _
  $region13: #{mlp_forward.1} parent=0 // pred_fallthru
    _

</llo_original>
